<compile_context>
chip_gen: v5e
topology: v5e:2x2
jax: 0.10.0
libtpu: 0.0.40
codegen_flags: <defaults>
</compile_context>

<pallas_src>
import functools

import jax
import jax.numpy as jnp
from jax import lax
from jax.experimental import pallas as pl
from jax.experimental.pallas import tpu as pltpu


def _deconv_bn_silu_kernel(w_ref, x_ref, shift_ref, o_ref, *, mxu_dtype, approx_act):
    # w_ref:     (Nc, C1)  deconv weight with BN scale folded in; rows = (c_out, ki, kj)
    # x_ref:     (C1, TM)  slab of input pixels in their NATIVE dtype (lane axis = pixels)
    # shift_ref: (Nc, 1)   folded BN shift (f32)
    # o_ref:     (Nc, TM)  intermediate (bf16 on the bf16 path)
    x = x_ref[...]
    if x.dtype != mxu_dtype:
        x = x.astype(mxu_dtype)           # VPU cast, hidden under the HBM-bound regime
    y = jnp.dot(w_ref[...], x, preferred_element_type=jnp.float32)   # MXU, f32 acc
    y = y + shift_ref[...]                # folded BN shift, f32 epilogue
    if approx_act:
        sig = pl.reciprocal(1.0 + jnp.exp(-y), approx=True)          # EUP exp + EUP vrcp
    else:
        sig = jax.nn.sigmoid(y)           # exact path (f32 correctness check)
    o_ref[...] = (y * sig).astype(o_ref.dtype)                       # SiLU


def conv_transpose_bn_silu(x, weight, gamma, beta, running_mean, running_var,
                           k=2, s=2, p=0, eps=1e-5,
                           tile_m_max=2048, compute_dtype=jnp.bfloat16):
    """Fused ConvTranspose2d(k=s, p=0, bias=False) + BatchNorm2d + SiLU (NCHW in/out).

    compute_dtype: MXU operand dtype (bf16 default; pass jnp.float32 for exactness).
    """
    # TODO(synk): general k != s or p != 0 (overlapping deconv taps) would need an
    # accumulating scatter; the module default (k=2, s=2, p=0) needs none.
    assert k == s and p == 0, "kernel assumes non-overlapping deconv (k == s, p == 0)"
    N, C1, H, W = x.shape
    C1_w, C2, kh, kw = weight.shape
    assert C1 == C1_w and kh == k and kw == k

    Nc = C2 * k * k
    HW = H * W
    out_dtype = x.dtype
    mxu_dtype = jnp.dtype(compute_dtype)
    use_bf16 = (mxu_dtype == jnp.bfloat16)
    inter_dtype = jnp.dtype(jnp.bfloat16) if use_bf16 else jnp.dtype(jnp.float32)

    # ---- BN folding (inference / running stats) -------------------------------
    scale_c = gamma.astype(jnp.float32) / jnp.sqrt(running_var.astype(jnp.float32) + eps)
    shift_c = beta.astype(jnp.float32) - running_mean.astype(jnp.float32) * scale_c
    scale_rows = jnp.repeat(scale_c, k * k)                   # rows ordered (c_out, ki, kj)
    shift_rows = jnp.repeat(shift_c, k * k).reshape(Nc, 1)    # stays f32 in the kernel

    # Fold the BN scale straight into the weight rows -> one less kernel operand.
    # (Weight is tiny; the one-time wrapper-side cast is fine -- unlike the activation.)
    w2dT = weight.astype(jnp.float32).reshape(C1, Nc).T * scale_rows[:, None]   # (Nc, C1)
    w2dT = w2dT.astype(mxu_dtype)

    # ---- operands --------------------------------------------------------------
    # RHS is NCHW x viewed as (N, C1, H*W): a pure reshape, NO dtype cast here --
    # the bf16 cast happens per-tile inside the kernel (saves a full HBM pass).
    x3d = x.reshape(N, C1, HW)

    # ---- per-generation tile / VMEM sizing -------------------------------------
    try:
        vmem_cap = int(pltpu.get_tpu_info().vmem_capacity_bytes)
    except Exception:
        vmem_cap = 64 * 1024 * 1024            # v7x worst case (smallest VMEM)
    x_item = jnp.dtype(x.dtype).itemsize
    w_item = jnp.dtype(mxu_dtype).itemsize
    o_item = jnp.dtype(inter_dtype).itemsize
    m_item = jnp.dtype(mxu_dtype).itemsize

    # Per pixel-column VMEM cost: double-buffered x stream (native dtype) + the
    # in-kernel cast copy (mxu dtype) + double-buffered out stream (intermediate
    # dtype) + f32 dot/epilogue intermediate.
    per_col = 2 * C1 * x_item + C1 * m_item + 2 * Nc * o_item + 4 * Nc
    cap = max(128, ((vmem_cap // 4) // max(per_col, 1)) // 128 * 128)
    tile_m = min(tile_m_max, cap)
    if HW <= tile_m:
        if HW >= 256:
            # keep >= 2 grid steps so DMA-in / matmul / DMA-out actually overlap
            tile_m = ((HW + 1) // 2 + 127) // 128 * 128
        else:
            tile_m = HW                    # single full-width block (always legal)
    grid_m = pl.cdiv(HW, tile_m)           # Pallas masks the ragged last block

    est = (2 * C1 * tile_m * x_item        # x double buffers (native dtype)
           + C1 * tile_m * m_item          # in-kernel bf16 copy of x
           + 2 * Nc * tile_m * o_item      # out double buffers (intermediate dtype)
           + Nc * tile_m * 4               # f32 dot/epilogue intermediate
           + 2 * Nc * (C1 * w_item + 4))   # resident weight + shift (double-buffered)
    vmem_limit = max(32 * 1024 * 1024, min(3 * vmem_cap // 4, 2 * est))
    vmem_limit = int(min(vmem_cap, max(vmem_limit, est + (8 << 20))))

    kernel = functools.partial(_deconv_bn_silu_kernel,
                               mxu_dtype=mxu_dtype,
                               approx_act=use_bf16)

    out3d = pl.pallas_call(
        kernel,
        out_shape=jax.ShapeDtypeStruct((N, Nc, HW), inter_dtype),
        grid_spec=pltpu.PrefetchScalarGridSpec(
            num_scalar_prefetch=0,
            grid=(N, grid_m),
            in_specs=[
                pl.BlockSpec((Nc, C1), lambda n, m: (0, 0)),               # weight (resident)
                pl.BlockSpec((None, C1, tile_m), lambda n, m: (n, 0, m)),  # x slab (squeezed N)
                pl.BlockSpec((Nc, 1), lambda n, m: (0, 0)),                # BN shift (resident)
            ],
            out_specs=pl.BlockSpec((None, Nc, tile_m), lambda n, m: (n, 0, m)),
        ),
        compiler_params=pltpu.CompilerParams(
            dimension_semantics=("parallel", "parallel"),
            vmem_limit_bytes=vmem_limit),
    )(w2dT, x3d, shift_rows)

    # ---- scatter back to NCHW ---------------------------------------------------
    # Rows ordered (c_out, ki, kj); stride == kernel => the scatter is a pure layout
    # pass.  The intermediate is bf16 on the default path, so this pass streams half
    # the bytes it used to; the cast back to the caller dtype is fused into it.
    y = out3d.reshape(N, C2, k, k, H, W)
    y = jnp.transpose(y, (0, 1, 4, 2, 5, 3))            # N, C2, H, ki, W, kj
    return y.reshape(N, C2, H * k, W * k).astype(out_dtype)   # NCHW


def _reference(x, weight, gamma, beta, running_mean, running_var,
               k=2, s=2, p=0, eps=1e-5):
    """Pure-JAX reference: deconv as input-dilated conv with flipped kernel."""
    w_t = jnp.flip(jnp.transpose(weight, (1, 0, 2, 3)), axis=(2, 3))   # OIHW
    y = lax.conv_general_dilated(
        x, w_t, window_strides=(1, 1),
        padding=[(k - 1 - p, k - 1 - p)] * 2,
        lhs_dilation=(s, s),
        dimension_numbers=('NCHW', 'OIHW', 'NCHW'))
    scale = (gamma / jnp.sqrt(running_var + eps)).reshape(1, -1, 1, 1)
    shift = (beta - running_mean * gamma / jnp.sqrt(running_var + eps)).reshape(1, -1, 1, 1)
    y = y * scale + shift
    return y * jax.nn.sigmoid(y)


if __name__ == "__main__":
    key = jax.random.PRNGKey(0)
    kx, kw, kg, kb, km, kv = jax.random.split(key, 6)

    B, C1, H, W = 2, 4, 16, 16
    C2, k, s, p = 8, 2, 2, 0

    x = jax.random.normal(kx, (B, C1, H, W), dtype=jnp.float32)
    # ConvTranspose2d weight shape: (in_channels, out_channels, kH, kW); no bias (bn=True)
    weight = jax.random.normal(kw, (C1, C2, k, k), dtype=jnp.float32) * 0.1
    gamma = 1.0 + 0.1 * jax.random.normal(kg, (C2,), dtype=jnp.float32)
    beta = 0.1 * jax.random.normal(kb, (C2,), dtype=jnp.float32)
    running_mean = 0.1 * jax.random.normal(km, (C2,), dtype=jnp.float32)
    running_var = jnp.abs(jax.random.normal(kv, (C2,), dtype=jnp.float32)) + 0.5

    ref = _reference(x, weight, gamma, beta, running_mean, running_var, k=k, s=s, p=p)

    # Exact f32 operand path (tight check of the matmul/BN/SiLU plumbing).
    out_f32 = conv_transpose_bn_silu(x, weight, gamma, beta, running_mean, running_var,
                                     k=k, s=s, p=p, compute_dtype=jnp.float32)
    out_f32 = jax.block_until_ready(out_f32)
    assert out_f32.shape == (B, C2, H * s, W * s), out_f32.shape
    assert jnp.allclose(out_f32, ref, atol=1e-5, rtol=1e-5), \
        float(jnp.max(jnp.abs(out_f32 - ref)))

    # Default (bf16 MXU, in-kernel cast of f32 x, bf16 intermediate, approx-recip
    # SiLU) -- the recommended production path; loose tolerance.
    out_def = conv_transpose_bn_silu(x, weight, gamma, beta, running_mean, running_var,
                                     k=k, s=s, p=p)
    out_def = jax.block_until_ready(out_def)
    assert out_def.shape == (B, C2, H * s, W * s), out_def.shape
    assert jnp.allclose(out_def, ref, atol=5e-2, rtol=5e-2), \
        float(jnp.max(jnp.abs(out_def - ref)))

    print("KERNEL_OK")
</pallas_src>

<mosaic_0001>
module attributes {stable_mosaic.version = 11 : i64} {
  func.func @_deconv_bn_silu_kernel(%arg0: i32, %arg1: i32, %arg2: memref<32x4xf32, #tpu.memory_space<vmem>>, %arg3: memref<1x4x128xf32, #tpu.memory_space<vmem>>, %arg4: memref<32x1xf32, #tpu.memory_space<vmem>>, %arg5: memref<1x32x128xf32, #tpu.memory_space<vmem>>) attributes {dimension_semantics = [#tpu.dimension_semantics<parallel>, #tpu.dimension_semantics<parallel>], iteration_bounds = array<i64: 2, 2>, scalar_prefetch = 0 : i64, scratch_operands = 0 : i64, tpu.core_type = #tpu.core_type<tc>, window_params = [{pipeline_mode = #tpu.pipeline_mode<synchronous>, transform_indices = @transform_0, window_bounds = array<i64: 32, 4>}, {transform_indices = @transform_1, window_bounds = array<i64: 1, 4, 128>}, {pipeline_mode = #tpu.pipeline_mode<synchronous>, transform_indices = @transform_2, window_bounds = array<i64: 32, 1>}, {transform_indices = @transform_3, window_bounds = array<i64: 1, 32, 128>}]} {
    %c0 = arith.constant 0 : index
    %c0_0 = arith.constant 0 : index
    %c0_1 = arith.constant 0 : index
    %0 = vector.load %arg3[%c0, %c0_0, %c0_1] : memref<1x4x128xf32, #tpu.memory_space<vmem>>, vector<1x4x128xf32>
    %1 = vector.shape_cast %0 : vector<1x4x128xf32> to vector<4x128xf32>
    %c0_2 = arith.constant 0 : index
    %c0_3 = arith.constant 0 : index
    %2 = vector.load %arg2[%c0_2, %c0_3] : memref<32x4xf32, #tpu.memory_space<vmem>>, vector<32x4xf32>
    %cst = arith.constant dense<0.000000e+00> : vector<32x128xf32>
    %3 = tpu.matmul %2, %1, %cst {dimension_numbers = #tpu.dot_dimension_numbers<[1], [0], [0], [1], [0, 0, 1, 1], [], []>} : vector<32x4xf32>, vector<4x128xf32>, vector<32x128xf32> -> vector<32x128xf32>
    %c0_4 = arith.constant 0 : index
    %c0_5 = arith.constant 0 : index
    %4 = vector.load %arg4[%c0_4, %c0_5] : memref<32x1xf32, #tpu.memory_space<vmem>>, vector<32x1xf32>
    %5 = vector.broadcast %4 : vector<32x1xf32> to vector<32x128xf32>
    %6 = arith.addf %3, %5 : vector<32x128xf32>
    %7 = arith.negf %6 : vector<32x128xf32>
    %8 = math.exp %7 : vector<32x128xf32>
    %cst_6 = arith.constant 1.000000e+00 : f32
    %9 = vector.broadcast %cst_6 : f32 to vector<32x128xf32>
    %10 = arith.addf %9, %8 : vector<32x128xf32>
    %11 = arith.divf %9, %10 : vector<32x128xf32>
    %12 = arith.mulf %6, %11 : vector<32x128xf32>
    %c0_7 = arith.constant 0 : index
    %c0_8 = arith.constant 0 : index
    %c0_9 = arith.constant 0 : index
    %13 = vector.load %arg5[%c0_7, %c0_8, %c0_9] : memref<1x32x128xf32, #tpu.memory_space<vmem>>, vector<1x32x128xf32>
    %14 = vector.shape_cast %13 : vector<1x32x128xf32> to vector<32x128xf32>
    %15 = vector.shape_cast %12 : vector<32x128xf32> to vector<1x32x128xf32>
    tpu.vector_store %arg5[%c0_7, %c0_8, %c0_9], %15 {strides = array<i32>} : memref<1x32x128xf32, #tpu.memory_space<vmem>>, vector<1x32x128xf32>,
    return
  }
  func.func @transform_0(%arg0: i32, %arg1: i32) -> (i32, i32) {
    %c0_i32 = arith.constant 0 : i32
    %c0_i32_0 = arith.constant 0 : i32
    %c0_i32_1 = arith.constant 0 : i32
    return %c0_i32, %c0_i32_0 : i32, i32
  }
  func.func @transform_1(%arg0: i32, %arg1: i32) -> (i32, i32, i32) {
    %c0_i32 = arith.constant 0 : i32
    %c0_i32_0 = arith.constant 0 : i32
    return %arg0, %c0_i32, %arg1 : i32, i32, i32
  }
  func.func @transform_2(%arg0: i32, %arg1: i32) -> (i32, i32) {
    %c0_i32 = arith.constant 0 : i32
    %c0_i32_0 = arith.constant 0 : i32
    %c0_i32_1 = arith.constant 0 : i32
    return %c0_i32, %c0_i32_0 : i32, i32
  }
  func.func @transform_3(%arg0: i32, %arg1: i32) -> (i32, i32, i32) {
    %c0_i32 = arith.constant 0 : i32
    %c0_i32_0 = arith.constant 0 : i32
    return %arg0, %c0_i32, %arg1 : i32, i32, i32
  }
}

</mosaic_0001>

<llo_original>
// kernel: tpu_custom_call.1
$region0: #{tpu_custom_call.1}
  #allocation0 [shape = 'u32[]', space=smem, size = 0x4, offset = 0x4, fixed_abs, tag = 'smem constant byte address 0x4 - core index']
  #allocation1 [shape = 'u32[72,128]{1,0:T(1,128)}', space=vmem, size = 0x9000, scoped, tag = 'internal scratch']
  %s0 = inlined_call_operand.vmem [shape: f32[32,4], index: 0, kind: input, shape index: {}]
  %s1 = inlined_call_operand.vmem [shape: f32[2,4,256], index: 1, kind: input, shape index: {}]
  %s2 = inlined_call_operand.vmem [shape: f32[32,1], index: 2, kind: input, shape index: {}]
  %s3 = inlined_call_operand.hbm [shape: f32[2,32,256], index: 3, kind: output, shape index: {}]
  %s4 = sld [smem:[#allocation0]]
  $region45: #{tpu_custom_call.1} parent=0
    _
  %s6 = ssub.s32 1, %s4
  %s7 = scalar_select 0, %s6, %s4
  $region1: #{tpu_custom_call.1} parent=0
    #allocation2 [shape = 'u8[32768]{0}', space=vmem, size = 0x8000, scoped, tag = 'output window, operand 0']
    #allocation3 [shape = 's32[2]{0}', space=sflag, size = 0x8, scoped, tag = 'scoped memory for tpu_custom_call.1']
    %8 = vsyncpa [#allocation3], 0
    %s9 = scalar_lea.sflag [#allocation3], 1
    %10 = vsyncpa %s9, 0
    loop: start=0, step=1, limit=6
    $region2: #{tpu_custom_call.1} parent=1 // loop_pre_header
      _
    $region3: #{tpu_custom_call.1} parent=1 // loop_header
      %s12 = sphi 0, %s16
      %p13 = scmp.ge.s32.totalorder %s12, 6
      %s19 = sphi 0, %s31
      %s20 = sphi 0, %s27
      %s21 = sphi 0, %s19
      %s22 = sphi 0, %s20
      %s23 = sphi 0, %s21
      %s24 = sphi 0, %s22
      %s32 = sphi 0, %s32
      %s34 = sphi 0, %s32
      %s35 = sphi 0, %s34
      %s49 = sphi 0, %s35
      %s57 = sphi 0, %s59
      %s60 = sphi 0, %s57
      %s61 = sphi 0, %s60
      %s77 = sphi 0, %s61
      %s81 = sphi 0, %s81
      %s83 = sphi 0, %s81
      %s84 = sphi 0, %s83
      %s98 = sphi 0, %s84
      %s106 = sphi 0, %s108
      %s109 = sphi 0, %s106
      %s110 = sphi 0, %s109
      %s126 = sphi 0, %s110
    $region4: #{tpu_custom_call.1} parent=1 // loop_header_branch
      %15 = sbr.rel (%p13) target = $region8
    $region5: #{tpu_custom_call.1} parent=1 // loop_body
      %s17 = ssub.s32 %s12, 1
      %s18 = ssub.s32 %s12, 2
      %s25 = sadd.s32 1, %s20
      %p26 = scmp.ge.s32.totalorder %s25, 2
      %s27 = scalar_select %p26, 0, %s25
      %s28 = sadd.s32 1, %s19
      %s29 = scalar_select %p26, %s28, %s19
      %p30 = scmp.ge.s32.totalorder %s29, 2
      %s31 = scalar_select %p30, 0, %s29
      %s33 = sadd.s32 %s32, 1
      %p36 = scmp.eq.s32.totalorder %s12, 3
      %p37 = scmp.ne.s32.totalorder %s32, %s34
      %p38 = scmp.eq.s32.totalorder %s12, 0
      %p39 = por %p37, %p38
      %p40 = scmp.ne.s32.totalorder %s32, %s34
      %p41 = scmp.eq.s32.totalorder %s17, 3
      %p42 = por %p40, %p41
      %p43 = scmp.ne.s32.totalorder %s34, %s35
      %p44 = scmp.eq.s32.totalorder %s17, 0
      %p45 = por %p43, %p44
      %p46 = scmp.ne.s32.totalorder %s34, %s35
      %p47 = scmp.eq.s32.totalorder %s18, 3
      %p48 = por %p46, %p47
      %p50 = scmp.ne.s32.totalorder %s35, %s49
      %p51 = scmp.eq.s32.totalorder %s18, 0
      %p52 = por %p50, %p51
      %s53 = ssub.s32 %s19, %s31
      %s54 = ssub.s32 %s20, %s27
      %s55 = sor.u32 %s53, %s54
      %p56 = scmp.eq.s32.totalorder %s55, 0
      %s58 = sadd.s32 %s57, 1
      %s59 = scalar_select %p56, %s57, %s58
      %p62 = pneg %p56
      %p63 = scmp.eq.s32.totalorder %s12, 3
      %p64 = por %p62, %p63
      %p65 = scmp.ne.s32.totalorder %s57, %s60
      %p66 = scmp.eq.s32.totalorder %s12, 0
      %p67 = por %p65, %p66
      %p68 = scmp.ne.s32.totalorder %s57, %s60
      %p69 = scmp.eq.s32.totalorder %s17, 3
      %p70 = por %p68, %p69
      %p71 = scmp.ne.s32.totalorder %s60, %s61
      %p72 = scmp.eq.s32.totalorder %s17, 0
      %p73 = por %p71, %p72
      %p74 = scmp.ne.s32.totalorder %s60, %s61
      %p75 = scmp.eq.s32.totalorder %s18, 3
      %p76 = por %p74, %p75
      %p78 = scmp.ne.s32.totalorder %s61, %s77
      %p79 = scmp.eq.s32.totalorder %s18, 0
      %p80 = por %p78, %p79
      %s82 = sadd.s32 %s81, 1
      %p85 = scmp.eq.s32.totalorder %s12, 3
      %p86 = scmp.ne.s32.totalorder %s81, %s83
      %p87 = scmp.eq.s32.totalorder %s12, 0
      %p88 = por %p86, %p87
      %p89 = scmp.ne.s32.totalorder %s81, %s83
      %p90 = scmp.eq.s32.totalorder %s17, 3
      %p91 = por %p89, %p90
      %p92 = scmp.ne.s32.totalorder %s83, %s84
      %p93 = scmp.eq.s32.totalorder %s17, 0
      %p94 = por %p92, %p93
      %p95 = scmp.ne.s32.totalorder %s83, %s84
      %p96 = scmp.eq.s32.totalorder %s18, 3
      %p97 = por %p95, %p96
      %p99 = scmp.ne.s32.totalorder %s84, %s98
      %p100 = scmp.eq.s32.totalorder %s18, 0
      %p101 = por %p99, %p100
      %s102 = ssub.s32 %s19, %s31
      %s103 = ssub.s32 %s20, %s27
      %s104 = sor.u32 %s102, %s103
      %p105 = scmp.eq.s32.totalorder %s104, 0
      %s107 = sadd.s32 %s106, 1
      %s108 = scalar_select %p105, %s106, %s107
      %p111 = pneg %p105
      %p112 = scmp.eq.s32.totalorder %s12, 3
      %p113 = por %p111, %p112
      %p114 = scmp.ne.s32.totalorder %s106, %s109
      %p115 = scmp.eq.s32.totalorder %s12, 0
      %p116 = por %p114, %p115
      %p117 = scmp.ne.s32.totalorder %s106, %s109
      %p118 = scmp.eq.s32.totalorder %s17, 3
      %p119 = por %p117, %p118
      %p120 = scmp.ne.s32.totalorder %s109, %s110
      %p121 = scmp.eq.s32.totalorder %s17, 0
      %p122 = por %p120, %p121
      %p123 = scmp.ne.s32.totalorder %s109, %s110
      %p124 = scmp.eq.s32.totalorder %s18, 3
      %p125 = por %p123, %p124
      %p127 = scmp.ne.s32.totalorder %s110, %s126
      %p128 = scmp.eq.s32.totalorder %s18, 0
      %p129 = por %p127, %p128
      %p130 = scmp.le.s32.totalorder 1, %s12
      %p131 = scmp.lt.s32.totalorder %s12, 5
      %p132 = pnand %p130, %p131
      %p133 = pneg %p132
      // Predicated region
      $region9: #{tpu_custom_call.1} parent=5 // pred_check
        _
      $region10: #{tpu_custom_call.1} parent=5 // pred_check_branch
        %135 = sbr.rel (%p132) target = $region12
      $region11: #{tpu_custom_call.1} parent=5 // pred_region
        %s136 = ssub.s32 %s12, 1
        // Predicated region
        $region13: #{tpu_custom_call.1} parent=11 // pred_check
          %p137 = pneg %p45
        $region14: #{tpu_custom_call.1} parent=11 // pred_check_branch
          %139 = sbr.rel (%p137) target = $region16
        $region15: #{tpu_custom_call.1} parent=11 // pred_region
          _
        $region16: #{tpu_custom_call.1} parent=11 // pred_fallthru
          _
        // Predicated region
        $region17: #{tpu_custom_call.1} parent=11 // pred_check
          %p140 = pneg %p94
        $region18: #{tpu_custom_call.1} parent=11 // pred_check_branch
          %142 = sbr.rel (%p140) target = $region20
        $region19: #{tpu_custom_call.1} parent=11 // pred_region
          _
        $region20: #{tpu_custom_call.1} parent=11 // pred_fallthru
          _
      $region12: #{tpu_custom_call.1} parent=5 // pred_fallthru
        _
      %p143 = scmp.lt.s32.totalorder %s12, 4
      // Predicated region
      $region21: #{tpu_custom_call.1} parent=5 // pred_check
        %p144 = pneg %p143
      $region22: #{tpu_custom_call.1} parent=5 // pred_check_branch
        %146 = sbr.rel (%p144) target = $region24
      $region23: #{tpu_custom_call.1} parent=5 // pred_region
        // Predicated region
        $region25: #{tpu_custom_call.1} parent=23 // pred_check
          %p147 = pneg %p67
        $region26: #{tpu_custom_call.1} parent=23 // pred_check_branch
          %149 = sbr.rel (%p147) target = $region28
        $region27: #{tpu_custom_call.1} parent=23 // pred_region
          %p150 = scmp.lt.s32.totalorder %s19, 1
          %s151 = scalar_select %p150, %s19, 1
          %p152 = scmp.lt.s32.totalorder %s20, 1
          %s153 = scalar_select %p152, %s20, 1
          %s154 = smul.addr %s151, 2
          %s155 = sadd.s32 %s153, %s154
          %s156 = smul.addr %s155, 4
          %s157 = scalar_lea.vmem %s1, %s156
        $region28: #{tpu_custom_call.1} parent=23 // pred_fallthru
          _
      $region24: #{tpu_custom_call.1} parent=5 // pred_fallthru
        _
      %p158 = scmp.le.s32.totalorder 1, %s12
      %p159 = scmp.lt.s32.totalorder %s12, 5
      %p160 = pnand %p158, %p159
      %p161 = pneg %p160
      // Predicated region
      $region29: #{tpu_custom_call.1} parent=5 // pred_check
        _
      $region30: #{tpu_custom_call.1} parent=5 // pred_check_branch
        %163 = sbr.rel (%p160) target = $region32
      $region31: #{tpu_custom_call.1} parent=5 // pred_region
        %s164 = ssub.s32 %s12, 1
        %p165 = pneg %p45
        %p166 = pneg %p42
        %p167 = scmp.lt.s32.totalorder %s21, 1
        %s168 = scalar_select %p167, %s21, 1
        %p169 = scmp.lt.s32.totalorder %s22, 1
        %s170 = scalar_select %p169, %s22, 1
        %s171 = smul.addr %s168, 2
        %s172 = sadd.s32 %s170, %s171
        %s173 = smul.addr %s172, 4
        %s174 = scalar_lea.vmem %s1, %s173
        %p175 = pneg %p73
        %p176 = pneg %p70
        %p177 = pneg %p94
        %p178 = pneg %p91
        %p179 = pneg %p122
        %p180 = pneg %p119
        %s181 = sand.u32 %s109, 1
        %s182 = scalar_lea.sflag [#allocation3], %s181
        %s183 = sand.u32 %s109, 1
        %s184 = smul.addr %s183, 32
        %s185 = scalar_lea.vmem [#allocation2], %s184
        %p186 = scmp.lt.s32.totalorder %s21, 1
        %s187 = scalar_select %p186, %s21, 1
        %p188 = scmp.lt.s32.totalorder %s22, 1
        %s189 = scalar_select %p188, %s22, 1
        %s190 = smul.addr %s187, 2
        %s191 = sadd.s32 %s189, %s190
        %s192 = smul.addr %s191, 4
        %s193 = scalar_lea.vmem %s1, %s192
        %v194 = vld [vmem:[%s193] sm:$0xf]
        %v195 = vld [vmem:[%s0] sm:$0xff]
        %v196 = vld [vmem:[%s0 + $0x8] sm:$0xff]
        %v197 = vld [vmem:[%s0 + $0x10] sm:$0xff]
        %v198 = vld [vmem:[%s0 + $0x18] sm:$0xff]
        %v199 = vld [vmem:[%s2] sm:$0xff]
        %v200 = vld [vmem:[%s2 + $0x8] sm:$0xff]
        %v201 = vld [vmem:[%s2 + $0x10] sm:$0xff]
        %v202 = vld [vmem:[%s2 + $0x18] sm:$0xff]
        %204 = vset.pattern.permute.xlu0 0
        %205 = vperm.xlu0 %204, %v199
        %v206 = vpop.permute.xlu0 %205
        %209 = vset.pattern.permute.xlu0 0
        %210 = vperm.xlu0 %209, %v200
        %v211 = vpop.permute.xlu0 %210
        %214 = vset.pattern.permute.xlu0 0
        %215 = vperm.xlu0 %214, %v201
        %v216 = vpop.permute.xlu0 %215
        %219 = vset.pattern.permute.xlu0 0
        %220 = vperm.xlu0 %219, %v202
        %v221 = vpop.permute.xlu0 %220
        %vm223 = vcmask 31744
        %v225 = vsel %vm223, %v195, 0
        %v228 = vsel %vm223, %v196, 0
        %v231 = vsel %vm223, %v197, 0
        %v234 = vsel %vm223, %v198, 0
        %vm236 = vcmask 1043456
        %v238 = vsel %vm236, %v194, 0
        %240 = vmatpush.msra.mxu0 0.0
        %241 = vmatpush.msra.mxu0 0.0
        %242 = vmatpush.msra.mxu0 0.0
        %243 = vmatpush.msra.mxu0 0.0
        %244 = vmatpush.msra.mxu0 0.0
        %245 = vmatpush.msra.mxu0 0.0
        %246 = vmatpush.msra.mxu0 0.0
        %247 = vmatpush.msra.mxu0 0.0
        %248 = vmatpush.msra.mxu0 0.0
        %249 = vmatpush.msra.mxu0 0.0
        %250 = vmatpush.msra.mxu0 0.0
        %251 = vmatpush.msra.mxu0 0.0
        %252 = vmatpush.msra.mxu0 0.0
        %253 = vmatpush.msra.mxu0 0.0
        %254 = vmatpush.msra.mxu0 0.0
        %255 = vmatpush.msra.mxu0 %v238
        %256 = vmatmul.f32.gmra.mxu0 %v225
        %v257 = vpop.f32.mrf.mxu0
        %v258 = vadd.f32 %v206, %v257
        %259 = vmatmul.f32.gmra.mxu0 %v228
        %v260 = vpop.f32.mrf.mxu0
        %v261 = vadd.f32 %v211, %v260
        %262 = vmatmul.f32.gmra.mxu0 %v231
        %v263 = vpop.f32.mrf.mxu0
        %v264 = vadd.f32 %v216, %v263
        %265 = vmatmul.f32.gmra.mxu0 %v234
        %v266 = vpop.f32.mrf.mxu0
        %v267 = vadd.f32 %v221, %v266
        %268 = vdwg.mxu0
        %v269 = vxor.u32 %v258, 2147483648
        %v270 = vxor.u32 %v261, 2147483648
        %v271 = vxor.u32 %v264, 2147483648
        %v272 = vxor.u32 %v267, 2147483648
        %v273 = vmul.f32 %v269, 1.442695
        %v274 = vpow.pop %v273
        %v275 = vmul.f32 %v270, 1.442695
        %v276 = vpow.pop %v275
        %v277 = vmul.f32 %v271, 1.442695
        %v278 = vpow.pop %v277
        %v279 = vmul.f32 %v272, 1.442695
        %v280 = vpow.pop %v279
        %v281 = vadd.f32 %v274, 1.0
        %v282 = vadd.f32 %v276, 1.0
        %v283 = vadd.f32 %v278, 1.0
        %v284 = vadd.f32 %v280, 1.0
        %v285 = vrcp.pop %v281
        %v286 = vmul.f32 %v281, %v285
        %v287 = vsub.f32 1.0, %v286
        %v288 = vmul.f32 %v285, %v287
        %v289 = vadd.f32 %v285, %v288
        %vm290 = vweird.f32 %v281
        %vm291 = vweird.f32 %v285
        %vm292 = vmor %vm290, %vm291
        %v293 = vsel %vm292, %v285, %v289
        %v294 = vand.u32 2147483647, %v281
        %vm295 = vcmp.eq.f32.partialorder %v294, 8.507059e+37
        %v296 = vand.u32 %v281, 2147483648
        %v297 = vor.u32 1.1754944e-38, %v296
        %v298 = vsel %vm295, %v297, %v293
        %v299 = vmul.f32 1.0, %v298
        %v300 = vrcp.pop %v282
        %v301 = vmul.f32 %v282, %v300
        %v302 = vsub.f32 1.0, %v301
        %v303 = vmul.f32 %v300, %v302
        %v304 = vadd.f32 %v300, %v303
        %vm305 = vweird.f32 %v282
        %vm306 = vweird.f32 %v300
        %vm307 = vmor %vm305, %vm306
        %v308 = vsel %vm307, %v300, %v304
        %v309 = vand.u32 2147483647, %v282
        %vm310 = vcmp.eq.f32.partialorder %v309, 8.507059e+37
        %v311 = vand.u32 %v282, 2147483648
        %v312 = vor.u32 1.1754944e-38, %v311
        %v313 = vsel %vm310, %v312, %v308
        %v314 = vmul.f32 1.0, %v313
        %v315 = vrcp.pop %v283
        %v316 = vmul.f32 %v283, %v315
        %v317 = vsub.f32 1.0, %v316
        %v318 = vmul.f32 %v315, %v317
        %v319 = vadd.f32 %v315, %v318
        %vm320 = vweird.f32 %v283
        %vm321 = vweird.f32 %v315
        %vm322 = vmor %vm320, %vm321
        %v323 = vsel %vm322, %v315, %v319
        %v324 = vand.u32 2147483647, %v283
        %vm325 = vcmp.eq.f32.partialorder %v324, 8.507059e+37
        %v326 = vand.u32 %v283, 2147483648
        %v327 = vor.u32 1.1754944e-38, %v326
        %v328 = vsel %vm325, %v327, %v323
        %v329 = vmul.f32 1.0, %v328
        %v330 = vrcp.pop %v284
        %v331 = vmul.f32 %v284, %v330
        %v332 = vsub.f32 1.0, %v331
        %v333 = vmul.f32 %v330, %v332
        %v334 = vadd.f32 %v330, %v333
        %vm335 = vweird.f32 %v284
        %vm336 = vweird.f32 %v330
        %vm337 = vmor %vm335, %vm336
        %v338 = vsel %vm337, %v330, %v334
        %v339 = vand.u32 2147483647, %v284
        %vm340 = vcmp.eq.f32.partialorder %v339, 8.507059e+37
        %v341 = vand.u32 %v284, 2147483648
        %v342 = vor.u32 1.1754944e-38, %v341
        %v343 = vsel %vm340, %v342, %v338
        %v344 = vmul.f32 1.0, %v343
        %v345 = vmul.f32 %v258, %v299
        %v346 = vmul.f32 %v261, %v314
        %v347 = vmul.f32 %v264, %v329
        %v348 = vmul.f32 %v267, %v344
        %349 = vst [vmem:[%s185] sm:$0xff] %v345
        %350 = vst [vmem:[%s185 + $0x8] sm:$0xff] %v346
        %351 = vst [vmem:[%s185 + $0x10] sm:$0xff] %v347
        %352 = vst [vmem:[%s185 + $0x18] sm:$0xff] %v348
        %s353 = sand.u32 %s109, 1
        %s354 = scalar_lea.sflag [#allocation3], %s353
        %s355 = sand.u32 %s109, 1
        %s356 = smul.addr %s355, 32
        %s357 = scalar_lea.vmem [#allocation2], %s356
        // Predicated region
        $region33: #{tpu_custom_call.1} parent=31 // pred_check
          %p358 = pneg %p119
        $region34: #{tpu_custom_call.1} parent=31 // pred_check_branch
          %360 = sbr.rel (%p358) target = $region36
        $region35: #{tpu_custom_call.1} parent=31 // pred_region
          %362 = vsyncadd %s354, 0
          %s363 = smul.addr %s21, 8
          %s364 = sadd.s32 %s22, %s363
          %s365 = smul.addr %s364, 8
          %s366 = scalar_lea.hbm %s3, %s365
          %s367 = sshll.u32 %s357, 4
          %s368 = int_to_ptr.vmem [resolvable:$true] %s367
          %s369 = sshll.u32 %s366, 4
          %s370 = int_to_ptr.hbm [resolvable:$true] %s369
          %375 = dma.vmem_to_hbm [thread:$0]  %s368, 512, %s370, %s354, 128, 256, 8
        $region36: #{tpu_custom_call.1} parent=31 // pred_fallthru
          _
      $region32: #{tpu_custom_call.1} parent=5 // pred_fallthru
        _
      %p376 = scmp.le.s32.totalorder 2, %s12
      // Predicated region
      $region37: #{tpu_custom_call.1} parent=5 // pred_check
        %p377 = pneg %p376
      $region38: #{tpu_custom_call.1} parent=5 // pred_check_branch
        %379 = sbr.rel (%p377) target = $region40
      $region39: #{tpu_custom_call.1} parent=5 // pred_region
        %s380 = ssub.s32 %s12, 2
        // Predicated region
        $region41: #{tpu_custom_call.1} parent=39 // pred_check
          %p381 = pneg %p125
        $region42: #{tpu_custom_call.1} parent=39 // pred_check_branch
          %383 = sbr.rel (%p381) target = $region44
        $region43: #{tpu_custom_call.1} parent=39 // pred_region
          %s384 = sand.u32 %s110, 1
          %s385 = scalar_lea.sflag [#allocation3], %s384
          %s386 = sand.u32 %s110, 1
          %s387 = smul.addr %s386, 32
          %s388 = scalar_lea.vmem [#allocation2], %s387
          %390 = dma.done %s385, 512
        $region44: #{tpu_custom_call.1} parent=39 // pred_fallthru
          _
      $region40: #{tpu_custom_call.1} parent=5 // pred_fallthru
        _
    $region6: #{tpu_custom_call.1} parent=1 // loop_footer
      %s16 = sadd.s32 1, %s12
    $region7: #{tpu_custom_call.1} parent=1 // loop_footer_branch
      %11 = sbr.rel target = $region3
    $region8: #{tpu_custom_call.1} parent=1 // loop_exit
      _
    %391 = vsyncpa [#allocation3], 1
    %s392 = scalar_lea.sflag [#allocation3], 1
    %393 = vsyncpa %s392, 1

</llo_original>
